<compile_context>
chip_gen: v6e
topology: v6e:2x2x1
jax: 0.10.0
libtpu: 0.0.40
codegen_flags: <defaults>
</compile_context>

<pallas_src>
import jax
import jax.numpy as jnp
from jax.experimental import pallas as pl
from jax.experimental.pallas import tpu as pltpu

_TILE_ROWS_MAX = 512               # packed rows per grid step (power of two, multiple of 8)
_VMEM_LIMIT = 32 * 1024 * 1024     # explicit scoped-VMEM cap, safe on v5e/v6e/v7x


def _round_up(x, m):
    return (x + m - 1) // m * m


def _pick_tile_rows(m_rows):
    """Largest power-of-two tile (<= _TILE_ROWS_MAX, >= 8) that yields >= 2 grid steps."""
    t = _TILE_ROWS_MAX
    while t > 8 and _round_up(m_rows, t) // t < 2:
        t //= 2
    return t


# --------------------------- Pallas kernels ---------------------------------

def _conv_stats_kernel(p_ref, w_ref, stats_ref):
    """Pass 1: per-tile BN batch statistics only (the activation never hits HBM).

    p_ref:(TM,PK) bf16   w_ref:(PK,Cp) bf16   stats_ref:(8,Cp) f32
    Row 0 = column sums of y, row 1 = column sums of y*y; rows 2..7 are left unwritten
    (the wrapper only reads rows 0-1), avoiding the concat/zero-vreg stores.
    """
    y = jnp.dot(p_ref[...], w_ref[...], preferred_element_type=jnp.float32)
    stats_ref[0:1, :] = jnp.sum(y, axis=0, keepdims=True)
    stats_ref[1:2, :] = jnp.sum(y * y, axis=0, keepdims=True)


def _conv_bn_relu_kernel(p_ref, w_ref, scale_ref, shift_ref, o_ref):
    """Pass 2: fused conv (one im2col matmul) + BatchNorm apply + ReLU; bf16 lane-dense store.

    Epilogue math is kept in f32 (v5e-safe); scale/shift are per-lane (per-channel, tiled
    across the packed pixel phases)."""
    y = jnp.dot(p_ref[...], w_ref[...], preferred_element_type=jnp.float32)
    o_ref[...] = jnp.maximum(y * scale_ref[...] + shift_ref[...], 0.0).astype(o_ref.dtype)


# --------------------------- per-stage driver --------------------------------

def _conv_bn_relu(patches, w2d, gamma, beta, *, eps):
    """patches:(M,K) float  w2d:(K,C_out) f32  gamma,beta:(C_out,) f32.
    Returns ReLU(BN(patches @ w2d)) as an (M, C_out) bf16 array using training-mode
    (biased-variance) batch statistics."""
    M, K = patches.shape
    C_out = w2d.shape[1]

    # Pack P pixels per 128-lane output row via a block-diagonal weight so the HBM activation
    # stream is truly lane-dense (no 128/C_out zero-lane inflation, no masked stores).
    if C_out < 128 and 128 % C_out == 0:
        P = 128 // C_out
        Cp = 128
        w_blk = jnp.einsum("pq,kc->pkqc", jnp.eye(P, dtype=jnp.float32), w2d)
        w_blk = w_blk.reshape(P * K, Cp)
    else:
        P = 1
        Cp = _round_up(C_out, 128)
        w_blk = jnp.pad(w2d, ((0, 0), (0, Cp - C_out)))
    PK = P * K
    w_blk = w_blk.astype(jnp.bfloat16)

    m_rows = -(-M // P)                        # packed rows actually needed
    tile_rows = _pick_tile_rows(m_rows)        # >= 2 grid steps (v7x megacore)
    m_packed = _round_up(m_rows, tile_rows)    # padded rows are zeros -> contribute 0 to stats
    num_tiles = m_packed // tile_rows

    patches_p = jnp.pad(patches.astype(jnp.bfloat16), ((0, m_packed * P - M), (0, 0)))
    patches_p = patches_p.reshape(m_packed, PK)   # K kept at its true length (no 128-pad in HBM)

    matmul_flops = 2 * m_packed * PK * Cp
    patch_bytes = m_packed * PK * 2
    weight_bytes = PK * Cp * 2                    # constant block: DMA'd once, not per step

    # ---- pass 1: batch statistics only (no activation round-trip) -------------
    stats = pl.pallas_call(
        _conv_stats_kernel,
        out_shape=jax.ShapeDtypeStruct((num_tiles * 8, Cp), jnp.float32),
        grid=(num_tiles,),
        in_specs=[pl.BlockSpec((tile_rows, PK), lambda i: (i, 0)),
                  pl.BlockSpec((PK, Cp), lambda i: (0, 0))],
        out_specs=pl.BlockSpec((8, Cp), lambda i: (i, 0)),
        compiler_params=pltpu.CompilerParams(
            dimension_semantics=("parallel",), vmem_limit_bytes=_VMEM_LIMIT),
        cost_estimate=pl.CostEstimate(
            flops=matmul_flops, transcendentals=0,
            bytes_accessed=patch_bytes + weight_bytes + num_tiles * 8 * Cp * 4),
    )(patches_p, w_blk)

    stats = stats.reshape(num_tiles, 8, Cp)
    tot = jnp.sum(stats[:, 0, :], axis=0)
    tot_sq = jnp.sum(stats[:, 1, :], axis=0)
    if P > 1:
        tot = tot.reshape(P, C_out).sum(axis=0)
        tot_sq = tot_sq.reshape(P, C_out).sum(axis=0)
    else:
        tot, tot_sq = tot[:C_out], tot_sq[:C_out]

    # NOTE: E[y^2]-E[y]^2 in f32 can lose precision for huge M / large-mean activations;
    # clamped here, switch to a per-tile centered (Chan) merge if that ever bites.
    mean = tot / M
    var = jnp.maximum(tot_sq / M - mean * mean, 0.0)   # biased variance (torch train mode)
    inv = jax.lax.rsqrt(var + eps)
    scale_c = gamma * inv
    shift_c = beta - mean * scale_c
    if P > 1:
        scale_l = jnp.tile(scale_c, P).reshape(1, Cp)  # lane l -> channel l % C_out
        shift_l = jnp.tile(shift_c, P).reshape(1, Cp)
    else:
        scale_l = jnp.pad(scale_c, (0, Cp - C_out)).reshape(1, Cp)
        shift_l = jnp.pad(shift_c, (0, Cp - C_out)).reshape(1, Cp)

    # ---- pass 2: fused conv + BN apply + ReLU, bf16 lane-dense output ---------
    out_packed = pl.pallas_call(
        _conv_bn_relu_kernel,
        out_shape=jax.ShapeDtypeStruct((m_packed, Cp), jnp.bfloat16),
        grid=(num_tiles,),
        in_specs=[pl.BlockSpec((tile_rows, PK), lambda i: (i, 0)),
                  pl.BlockSpec((PK, Cp), lambda i: (0, 0)),
                  pl.BlockSpec((1, Cp), lambda i: (0, 0)),
                  pl.BlockSpec((1, Cp), lambda i: (0, 0))],
        out_specs=pl.BlockSpec((tile_rows, Cp), lambda i: (i, 0)),
        compiler_params=pltpu.CompilerParams(
            dimension_semantics=("parallel",), vmem_limit_bytes=_VMEM_LIMIT),
        cost_estimate=pl.CostEstimate(
            flops=matmul_flops + 2 * m_packed * Cp, transcendentals=0,
            bytes_accessed=patch_bytes + weight_bytes + 2 * Cp * 4 + m_packed * Cp * 2),
    )(patches_p, w_blk, scale_l, shift_l)

    if P > 1:
        return out_packed.reshape(m_packed * P, C_out)[:M]
    return out_packed[:M, :C_out]


# --------------------------- wrapper glue (layout only) ----------------------

def _im2col_spatial(x_cl, k, stride, pad):
    """x_cl:(N,D,H,W,C) -> patches (N*D*H_out*W_out, k*k*C), columns in (kh,kw,c) order."""
    N, D, H, W, C = x_cl.shape
    xp = jnp.pad(x_cl, ((0, 0), (0, 0), (pad, pad), (pad, pad), (0, 0)))
    H_out = (H + 2 * pad - k) // stride + 1
    W_out = (W + 2 * pad - k) // stride + 1
    cols = []
    for kh in range(k):
        for kw in range(k):
            cols.append(xp[:, :,
                           kh:kh + (H_out - 1) * stride + 1:stride,
                           kw:kw + (W_out - 1) * stride + 1:stride, :])
    patches = jnp.concatenate(cols, axis=-1)
    return patches.reshape(N * D * H_out * W_out, k * k * C), (N, D, H_out, W_out)


def _im2col_temporal(x_cl, k, stride, pad):
    """x_cl:(N,D,H,W,C) -> patches (N*D_out*H*W, k*C), columns in (kd,c) order."""
    N, D, H, W, C = x_cl.shape
    xp = jnp.pad(x_cl, ((0, 0), (pad, pad), (0, 0), (0, 0), (0, 0)))
    D_out = (D + 2 * pad - k) // stride + 1
    cols = [xp[:, kd:kd + (D_out - 1) * stride + 1:stride, :, :, :] for kd in range(k)]
    patches = jnp.concatenate(cols, axis=-1)
    return patches.reshape(N * D_out * H * W, k * C), (N, D_out, H, W)


def _stage(x_cl, weight, gamma, beta, *, kind, k, stride, pad, eps):
    """One Conv3d(bias=False) -> BatchNorm3d(batch stats) -> ReLU stage, channels-last, bf16 out."""
    C_out = weight.shape[0]
    if kind == "spatial":
        patches, out_dims = _im2col_spatial(x_cl, k, stride, pad)
    else:
        patches, out_dims = _im2col_temporal(x_cl, k, stride, pad)
    # torch (C_out, C_in, kD, kH, kW) -> (kD*kH*kW*C_in, C_out), matching patch column order.
    w2d = jnp.transpose(weight, (2, 3, 4, 1, 0)).reshape(-1, C_out).astype(jnp.float32)
    out2d = _conv_bn_relu(patches, w2d, gamma.astype(jnp.float32), beta.astype(jnp.float32),
                          eps=float(eps))
    N, Do, Ho, Wo = out_dims
    return out2d.reshape(N, Do, Ho, Wo, C_out)


def sep_conv3d(x, w_s, g_s, b_s, w_t, g_t, b_t, *, kernel_size, stride, padding, eps=1e-3):
    """x:(N,C_in,D,H,W) NCDHW; weights in torch layout. Returns NCDHW output (bf16)."""
    x_cl = jnp.transpose(x, (0, 2, 3, 4, 1))
    y = _stage(x_cl, w_s, g_s, b_s, kind="spatial", k=kernel_size,
               stride=stride, pad=padding, eps=eps)            # bf16 activation feeds stage 2
    z = _stage(y, w_t, g_t, b_t, kind="temporal", k=kernel_size,
               stride=stride, pad=padding, eps=eps)
    return jnp.transpose(z, (0, 4, 1, 2, 3))


# --------------------------- pure-JAX reference ------------------------------

def _ref_stage(x, w, gamma, beta, *, stride, padding, eps):
    xq = x.astype(jnp.bfloat16).astype(jnp.float32)   # bf16 MXU operands, f32 accumulate
    wq = w.astype(jnp.bfloat16).astype(jnp.float32)
    y = jax.lax.conv_general_dilated(
        xq, wq, window_strides=stride, padding=[(p, p) for p in padding],
        dimension_numbers=("NCDHW", "OIDHW", "NCDHW"))
    mean = jnp.mean(y, axis=(0, 2, 3, 4), keepdims=True)
    var = jnp.mean((y - mean) ** 2, axis=(0, 2, 3, 4), keepdims=True)   # biased (train mode)
    y = (y - mean) * jax.lax.rsqrt(var + eps)
    y = y * gamma.reshape(1, -1, 1, 1, 1) + beta.reshape(1, -1, 1, 1, 1)
    # kernel stores stage activations in bf16 -- model that rounding here too
    return jnp.maximum(y, 0.0).astype(jnp.bfloat16).astype(jnp.float32)


def _reference(x, w_s, g_s, b_s, w_t, g_t, b_t, *, kernel_size, stride, padding, eps=1e-3):
    y = _ref_stage(x, w_s, g_s, b_s, stride=(1, stride, stride),
                   padding=(0, padding, padding), eps=eps)
    return _ref_stage(y, w_t, g_t, b_t, stride=(stride, 1, 1),
                      padding=(padding, 0, 0), eps=eps)


if __name__ == "__main__":
    key = jax.random.PRNGKey(0)
    k_x, k_ws, k_gs, k_bs, k_wt, k_gt, k_bt = jax.random.split(key, 7)

    # small shapes: batch=2, in_planes=4, out_planes=8, D=H=W=8, kernel=3, stride=1, pad=1
    N, C_in, C_out = 2, 4, 8
    D = H = W = 8
    ksz, stride, padding = 3, 1, 1

    x = jax.random.normal(k_x, (N, C_in, D, H, W), dtype=jnp.float32)
    w_s = 0.1 * jax.random.normal(k_ws, (C_out, C_in, 1, ksz, ksz), dtype=jnp.float32)
    g_s = 1.0 + 0.1 * jax.random.normal(k_gs, (C_out,), dtype=jnp.float32)
    b_s = 0.1 * jax.random.normal(k_bs, (C_out,), dtype=jnp.float32)
    w_t = 0.1 * jax.random.normal(k_wt, (C_out, C_out, ksz, 1, 1), dtype=jnp.float32)
    g_t = 1.0 + 0.1 * jax.random.normal(k_gt, (C_out,), dtype=jnp.float32)
    b_t = 0.1 * jax.random.normal(k_bt, (C_out,), dtype=jnp.float32)

    out = sep_conv3d(x, w_s, g_s, b_s, w_t, g_t, b_t,
                     kernel_size=ksz, stride=stride, padding=padding, eps=1e-3)
    out = jax.block_until_ready(out)

    ref = _reference(x, w_s, g_s, b_s, w_t, g_t, b_t,
                     kernel_size=ksz, stride=stride, padding=padding, eps=1e-3)

    assert out.shape == (N, C_out, D, H, W), out.shape
    max_err = float(jnp.max(jnp.abs(out.astype(jnp.float32) - ref)))
    assert jnp.allclose(out.astype(jnp.float32), ref, rtol=2e-2, atol=2e-2), max_err

    print("KERNEL_OK")
</pallas_src>

<mosaic_0001>
module attributes {stable_mosaic.version = 11 : i64} {
  func.func @_conv_stats_kernel(%arg0: i32, %arg1: memref<32x576xbf16, #tpu.memory_space<vmem>>, %arg2: memref<576x128xbf16, #tpu.memory_space<vmem>>, %arg3: memref<8x128xf32, #tpu.memory_space<vmem>>) attributes {dimension_semantics = [#tpu.dimension_semantics<parallel>], iteration_bounds = array<i64: 2>, scalar_prefetch = 0 : i64, scratch_operands = 0 : i64, tpu.core_type = #tpu.core_type<tc>, window_params = [{transform_indices = @transform_0, window_bounds = array<i64: 32, 576>}, {pipeline_mode = #tpu.pipeline_mode<synchronous>, transform_indices = @transform_1, window_bounds = array<i64: 576, 128>}, {transform_indices = @transform_2, window_bounds = array<i64: 8, 128>}]} {
    %c0 = arith.constant 0 : index
    %c0_0 = arith.constant 0 : index
    %0 = vector.load %arg1[%c0, %c0_0] : memref<32x576xbf16, #tpu.memory_space<vmem>>, vector<32x576xbf16>
    %c0_1 = arith.constant 0 : index
    %c0_2 = arith.constant 0 : index
    %1 = vector.load %arg2[%c0_1, %c0_2] : memref<576x128xbf16, #tpu.memory_space<vmem>>, vector<576x128xbf16>
    %cst = arith.constant dense<0.000000e+00> : vector<32x128xf32>
    %2 = tpu.matmul %0, %1, %cst {dimension_numbers = #tpu.dot_dimension_numbers<[1], [0], [0], [1], [0, 0, 1, 1], [], []>} : vector<32x576xbf16>, vector<576x128xbf16>, vector<32x128xf32> -> vector<32x128xf32>
    %cst_3 = arith.constant dense<0.000000e+00> : vector<128xf32>
    %3 = vector.multi_reduction <add>, %2, %cst_3 [0] : vector<32x128xf32> to vector<128xf32>
    %4 = vector.shape_cast %3 : vector<128xf32> to vector<1x128xf32>
    %c0_4 = arith.constant 0 : index
    %c0_5 = arith.constant 0 : index
    %5 = vector.load %arg3[%c0_4, %c0_5] : memref<8x128xf32, #tpu.memory_space<vmem>>, vector<1x128xf32>
    tpu.vector_store %arg3[%c0_4, %c0_5], %4 {strides = array<i32>} : memref<8x128xf32, #tpu.memory_space<vmem>>, vector<1x128xf32>,
    %6 = arith.mulf %2, %2 : vector<32x128xf32>
    %cst_6 = arith.constant dense<0.000000e+00> : vector<128xf32>
    %7 = vector.multi_reduction <add>, %6, %cst_6 [0] : vector<32x128xf32> to vector<128xf32>
    %8 = vector.shape_cast %7 : vector<128xf32> to vector<1x128xf32>
    %c1 = arith.constant 1 : index
    %c0_7 = arith.constant 0 : index
    %9 = vector.load %arg3[%c1, %c0_7] : memref<8x128xf32, #tpu.memory_space<vmem>>, vector<1x128xf32>
    tpu.vector_store %arg3[%c1, %c0_7], %8 {strides = array<i32>} : memref<8x128xf32, #tpu.memory_space<vmem>>, vector<1x128xf32>,
    return
  }
  func.func @transform_0(%arg0: i32) -> (i32, i32) {
    %c0_i32 = arith.constant 0 : i32
    %c0_i32_0 = arith.constant 0 : i32
    return %arg0, %c0_i32 : i32, i32
  }
  func.func @transform_1(%arg0: i32) -> (i32, i32) {
    %c0_i32 = arith.constant 0 : i32
    %c0_i32_0 = arith.constant 0 : i32
    %c0_i32_1 = arith.constant 0 : i32
    return %c0_i32, %c0_i32_0 : i32, i32
  }
  func.func @transform_2(%arg0: i32) -> (i32, i32) {
    %c0_i32 = arith.constant 0 : i32
    %c0_i32_0 = arith.constant 0 : i32
    return %arg0, %c0_i32 : i32, i32
  }
}

</mosaic_0001>

<llo_original>
// kernel: tpu_custom_call.1
$region0: #{tpu_custom_call.1}
  #allocation0 [shape = 'u32[]', space=smem, size = 0x4, offset = 0x4, fixed_abs, tag = 'smem constant byte address 0x4 - core index']
  #allocation1 [shape = 'u32[144,128]{1,0:T(1,128)}', space=vmem, size = 0x12000, scoped, tag = 'internal scratch']
  %s0 = inlined_call_operand.hbm [shape: bf16[64,576], index: 0, kind: input, shape index: {}]
  %s1 = inlined_call_operand.hbm [shape: bf16[576,128], index: 1, kind: input, shape index: {}]
  %s2 = inlined_call_operand.hbm [shape: f32[16,128], index: 2, kind: output, shape index: {}]
  %s3 = sld [smem:[#allocation0]]
  $region49: #{tpu_custom_call.1} parent=0
    _
  %s5 = ssub.s32 1, %s3
  %s6 = scalar_select 0, %s5, %s3
  $region1: #{tpu_custom_call.1} parent=0
    #allocation2 [shape = 'u8[81920]{0}', space=vmem, size = 0x14000, scoped, tag = 'input window, operand 0']
    #allocation3 [shape = 's32[2]{0}', space=sflag, size = 0x8, scoped, tag = 'scoped memory for tpu_custom_call.1']
    #allocation4 [shape = 's32[2]{0}', space=sflag, size = 0x8, scoped, tag = 'scoped memory for tpu_custom_call.1']
    #allocation5 [shape = 'u8[147456]{0}', space=vmem, size = 0x24000, scoped, tag = 'input window, operand 1, single buffered']
    #allocation6 [shape = 's32[1]{0}', space=sflag, size = 0x4, scoped, tag = 'scoped memory for tpu_custom_call.1']
    #allocation7 [shape = 'u8[8192]{0}', space=vmem, size = 0x2000, scoped, tag = 'output window, operand 0']
    %7 = vsyncpa [#allocation3], 0
    %s8 = scalar_lea.sflag [#allocation3], 1
    %9 = vsyncpa %s8, 0
    %10 = vsyncpa [#allocation6], 0
    %11 = vsyncpa [#allocation4], 0
    %s12 = scalar_lea.sflag [#allocation4], 1
    %13 = vsyncpa %s12, 0
    loop: start=0, step=1, limit=4
    $region2: #{tpu_custom_call.1} parent=1 // loop_pre_header
      _
    $region3: #{tpu_custom_call.1} parent=1 // loop_header
      %s15 = sphi 0, %s19
      %p16 = scmp.ge.s32.totalorder %s15, 4
      %s25 = sphi 0, %s27
      %s28 = sphi 0, %s25
      %s29 = sphi 0, %s28
      %s45 = sphi 0, %s29
      %s49 = sphi 0, %s49
      %s51 = sphi 0, %s49
      %s52 = sphi 0, %s51
      %s66 = sphi 0, %s52
      %s72 = sphi 0, %s74
      %s75 = sphi 0, %s72
      %s76 = sphi 0, %s75
      %s92 = sphi 0, %s76
    $region4: #{tpu_custom_call.1} parent=1 // loop_header_branch
      %18 = sbr.rel (%p16) target = $region8
    $region5: #{tpu_custom_call.1} parent=1 // loop_body
      %s20 = ssub.s32 %s15, 1
      %s21 = ssub.s32 %s15, 2
      %s22 = sadd.s32 %s15, 1
      %s23 = ssub.s32 %s15, %s22
      %p24 = scmp.eq.s32.totalorder %s23, 0
      %s26 = sadd.s32 %s25, 1
      %s27 = scalar_select %p24, %s25, %s26
      %p30 = pneg %p24
      %p31 = scmp.eq.s32.totalorder %s15, 1
      %p32 = por %p30, %p31
      %p33 = scmp.ne.s32.totalorder %s25, %s28
      %p34 = scmp.eq.s32.totalorder %s15, 0
      %p35 = por %p33, %p34
      %p36 = scmp.ne.s32.totalorder %s25, %s28
      %p37 = scmp.eq.s32.totalorder %s20, 1
      %p38 = por %p36, %p37
      %p39 = scmp.ne.s32.totalorder %s28, %s29
      %p40 = scmp.eq.s32.totalorder %s20, 0
      %p41 = por %p39, %p40
      %p42 = scmp.ne.s32.totalorder %s28, %s29
      %p43 = scmp.eq.s32.totalorder %s21, 1
      %p44 = por %p42, %p43
      %p46 = scmp.ne.s32.totalorder %s29, %s45
      %p47 = scmp.eq.s32.totalorder %s21, 0
      %p48 = por %p46, %p47
      %s50 = sadd.s32 %s49, 1
      %p53 = scmp.eq.s32.totalorder %s15, 1
      %p54 = scmp.ne.s32.totalorder %s49, %s51
      %p55 = scmp.eq.s32.totalorder %s15, 0
      %p56 = por %p54, %p55
      %p57 = scmp.ne.s32.totalorder %s49, %s51
      %p58 = scmp.eq.s32.totalorder %s20, 1
      %p59 = por %p57, %p58
      %p60 = scmp.ne.s32.totalorder %s51, %s52
      %p61 = scmp.eq.s32.totalorder %s20, 0
      %p62 = por %p60, %p61
      %p63 = scmp.ne.s32.totalorder %s51, %s52
      %p64 = scmp.eq.s32.totalorder %s21, 1
      %p65 = por %p63, %p64
      %p67 = scmp.ne.s32.totalorder %s52, %s66
      %p68 = scmp.eq.s32.totalorder %s21, 0
      %p69 = por %p67, %p68
      %s70 = ssub.s32 %s15, %s22
      %p71 = scmp.eq.s32.totalorder %s70, 0
      %s73 = sadd.s32 %s72, 1
      %s74 = scalar_select %p71, %s72, %s73
      %p77 = pneg %p71
      %p78 = scmp.eq.s32.totalorder %s15, 1
      %p79 = por %p77, %p78
      %p80 = scmp.ne.s32.totalorder %s72, %s75
      %p81 = scmp.eq.s32.totalorder %s15, 0
      %p82 = por %p80, %p81
      %p83 = scmp.ne.s32.totalorder %s72, %s75
      %p84 = scmp.eq.s32.totalorder %s20, 1
      %p85 = por %p83, %p84
      %p86 = scmp.ne.s32.totalorder %s75, %s76
      %p87 = scmp.eq.s32.totalorder %s20, 0
      %p88 = por %p86, %p87
      %p89 = scmp.ne.s32.totalorder %s75, %s76
      %p90 = scmp.eq.s32.totalorder %s21, 1
      %p91 = por %p89, %p90
      %p93 = scmp.ne.s32.totalorder %s76, %s92
      %p94 = scmp.eq.s32.totalorder %s21, 0
      %p95 = por %p93, %p94
      %p96 = scmp.le.s32.totalorder 1, %s15
      %p97 = scmp.lt.s32.totalorder %s15, 3
      %p98 = pnand %p96, %p97
      %p99 = pneg %p98
      // Predicated region
      $region9: #{tpu_custom_call.1} parent=5 // pred_check
        _
      $region10: #{tpu_custom_call.1} parent=5 // pred_check_branch
        %101 = sbr.rel (%p98) target = $region12
      $region11: #{tpu_custom_call.1} parent=5 // pred_region
        %s102 = ssub.s32 %s15, 1
        // Predicated region
        $region13: #{tpu_custom_call.1} parent=11 // pred_check
          %p103 = pneg %p62
        $region14: #{tpu_custom_call.1} parent=11 // pred_check_branch
          %105 = sbr.rel (%p103) target = $region16
        $region15: #{tpu_custom_call.1} parent=11 // pred_region
          %s107 = ssub.s32 4608, 4608
          %108 = vsyncadd [#allocation6], %s107
          %s109 = sshll.u32 [#allocation5], 4
          %s110 = int_to_ptr.vmem [resolvable:$true] %s109
          %115 = dma.hbm_to_vmem [thread:$0]  %s1, 4608, %s110, [#allocation6], 64, 64, 4
        $region16: #{tpu_custom_call.1} parent=11 // pred_fallthru
          _
      $region12: #{tpu_custom_call.1} parent=5 // pred_fallthru
        _
      %p116 = scmp.lt.s32.totalorder %s15, 2
      // Predicated region
      $region17: #{tpu_custom_call.1} parent=5 // pred_check
        %p117 = pneg %p116
      $region18: #{tpu_custom_call.1} parent=5 // pred_check_branch
        %119 = sbr.rel (%p117) target = $region20
      $region19: #{tpu_custom_call.1} parent=5 // pred_region
        // Predicated region
        $region21: #{tpu_custom_call.1} parent=19 // pred_check
          %p120 = pneg %p35
        $region22: #{tpu_custom_call.1} parent=19 // pred_check_branch
          %122 = sbr.rel (%p120) target = $region24
        $region23: #{tpu_custom_call.1} parent=19 // pred_region
          %s123 = sand.u32 %s25, 1
          %s124 = scalar_lea.sflag [#allocation3], %s123
          %s125 = sand.u32 %s25, 1
          %s126 = smul.addr %s125, 80
          %s127 = scalar_lea.vmem [#allocation2], %s126
          %s128 = smul.u32 4, %s15
          %s130 = ssub.s32 1280, 1280
          %131 = vsyncadd %s124, %s130
          %s132 = smul.addr %s128, 5
          %s133 = smul.addr %s132, 64
          %s134 = scalar_lea.hbm %s0, %s133
          %s135 = sshll.u32 %s127, 4
          %s136 = int_to_ptr.vmem [resolvable:$true] %s135
          %141 = dma.hbm_to_vmem [thread:$0]  %s134, 1280, %s136, %s124, 320, 320, 20
        $region24: #{tpu_custom_call.1} parent=19 // pred_fallthru
          _
      $region20: #{tpu_custom_call.1} parent=5 // pred_fallthru
        _
      %p142 = scmp.le.s32.totalorder 1, %s15
      %p143 = scmp.lt.s32.totalorder %s15, 3
      %p144 = pnand %p142, %p143
      %p145 = pneg %p144
      // Predicated region
      $region25: #{tpu_custom_call.1} parent=5 // pred_check
        _
      $region26: #{tpu_custom_call.1} parent=5 // pred_check_branch
        %147 = sbr.rel (%p144) target = $region28
      $region27: #{tpu_custom_call.1} parent=5 // pred_region
        %s148 = ssub.s32 %s15, 1
        %s149 = sand.u32 %s28, 1
        %s150 = scalar_lea.sflag [#allocation3], %s149
        %s151 = sand.u32 %s28, 1
        %s152 = smul.addr %s151, 80
        %s153 = scalar_lea.vmem [#allocation2], %s152
        // Predicated region
        $region29: #{tpu_custom_call.1} parent=27 // pred_check
          %p154 = pneg %p41
        $region30: #{tpu_custom_call.1} parent=27 // pred_check_branch
          %156 = sbr.rel (%p154) target = $region32
        $region31: #{tpu_custom_call.1} parent=27 // pred_region
          %157 = dma.done %s150, 1280
        $region32: #{tpu_custom_call.1} parent=27 // pred_fallthru
          _
        // Predicated region
        $region33: #{tpu_custom_call.1} parent=27 // pred_check
          %p158 = pneg %p62
        $region34: #{tpu_custom_call.1} parent=27 // pred_check_branch
          %160 = sbr.rel (%p158) target = $region36
        $region35: #{tpu_custom_call.1} parent=27 // pred_region
          %161 = dma.done [#allocation6], 4608
        $region36: #{tpu_custom_call.1} parent=27 // pred_fallthru
          _
        %s162 = sand.u32 %s28, 1
        %s163 = scalar_lea.sflag [#allocation3], %s162
        %s164 = sand.u32 %s28, 1
        %s165 = smul.addr %s164, 80
        %s166 = scalar_lea.vmem [#allocation2], %s165
        %p167 = pneg %p41
        %p168 = pneg %p38
        %p169 = pneg %p62
        %p170 = pneg %p59
        %p171 = pneg %p88
        %p172 = pneg %p85
        %s173 = sand.u32 %s75, 1
        %s174 = scalar_lea.sflag [#allocation4], %s173
        %s175 = sand.u32 %s75, 1
        %s176 = smul.addr %s175, 8
        %s177 = scalar_lea.vmem [#allocation7], %s176
        %s178 = smul.u32 4, %s20
        %v180 = vld [vmem:[%s153] sm:$0xff]
        %v181 = vld [vmem:[%s153 + $0x8] sm:$0xff]
        %v182 = vld [vmem:[%s153 + $0x10] sm:$0xf]
        %v183 = vld [vmem:[%s153 + $0x14] sm:$0xff]
        %v184 = vld [vmem:[%s153 + $0x1c] sm:$0xff]
        %v185 = vld [vmem:[%s153 + $0x24] sm:$0xf]
        %v186 = vld [vmem:[%s153 + $0x28] sm:$0xff]
        %v187 = vld [vmem:[%s153 + $0x30] sm:$0xff]
        %v188 = vld [vmem:[%s153 + $0x38] sm:$0xf]
        %v189 = vld [vmem:[%s153 + $0x3c] sm:$0xff]
        %v190 = vld [vmem:[%s153 + $0x44] sm:$0xff]
        %v191 = vld [vmem:[%s153 + $0x4c] sm:$0xf]
        %v192 = vld [vmem:[#allocation5] sm:$0xf]
        %v193 = vld [vmem:[#allocation5 + $0x4] sm:$0xf]
        %v194 = vld [vmem:[#allocation5 + $0x8] sm:$0xf]
        %v195 = vld [vmem:[#allocation5 + $0xc] sm:$0xf]
        %v196 = vld [vmem:[#allocation5 + $0x10] sm:$0xf]
        %v197 = vld [vmem:[#allocation5 + $0x14] sm:$0xf]
        %v198 = vld [vmem:[#allocation5 + $0x18] sm:$0xf]
        %v199 = vld [vmem:[#allocation5 + $0x1c] sm:$0xf]
        %v200 = vld [vmem:[#allocation5 + $0x20] sm:$0xf]
        %v201 = vld [vmem:[#allocation5 + $0x24] sm:$0xf]
        %v202 = vld [vmem:[#allocation5 + $0x28] sm:$0xf]
        %v203 = vld [vmem:[#allocation5 + $0x2c] sm:$0xf]
        %v204 = vld [vmem:[#allocation5 + $0x30] sm:$0xf]
        %v205 = vld [vmem:[#allocation5 + $0x34] sm:$0xf]
        %v206 = vld [vmem:[#allocation5 + $0x38] sm:$0xf]
        %v207 = vld [vmem:[#allocation5 + $0x3c] sm:$0xf]
        %v208 = vld [vmem:[#allocation5 + $0x40] sm:$0xf]
        %v209 = vld [vmem:[#allocation5 + $0x44] sm:$0xf]
        %v210 = vld [vmem:[#allocation5 + $0x48] sm:$0xf]
        %v211 = vld [vmem:[#allocation5 + $0x4c] sm:$0xf]
        %v212 = vld [vmem:[#allocation5 + $0x50] sm:$0xf]
        %v213 = vld [vmem:[#allocation5 + $0x54] sm:$0xf]
        %v214 = vld [vmem:[#allocation5 + $0x58] sm:$0xf]
        %v215 = vld [vmem:[#allocation5 + $0x5c] sm:$0xf]
        %v216 = vld [vmem:[#allocation5 + $0x60] sm:$0xf]
        %v217 = vld [vmem:[#allocation5 + $0x64] sm:$0xf]
        %v218 = vld [vmem:[#allocation5 + $0x68] sm:$0xf]
        %v219 = vld [vmem:[#allocation5 + $0x6c] sm:$0xf]
        %v220 = vld [vmem:[#allocation5 + $0x70] sm:$0xf]
        %v221 = vld [vmem:[#allocation5 + $0x74] sm:$0xf]
        %v222 = vld [vmem:[#allocation5 + $0x78] sm:$0xf]
        %v223 = vld [vmem:[#allocation5 + $0x7c] sm:$0xf]
        %v224 = vld [vmem:[#allocation5 + $0x80] sm:$0xf]
        %v225 = vld [vmem:[#allocation5 + $0x84] sm:$0xf]
        %v226 = vld [vmem:[#allocation5 + $0x88] sm:$0xf]
        %v227 = vld [vmem:[#allocation5 + $0x8c] sm:$0xf]
        %v228 = vld [vmem:[#allocation5 + $0x90] sm:$0xf]
        %v229 = vld [vmem:[#allocation5 + $0x94] sm:$0xf]
        %v230 = vld [vmem:[#allocation5 + $0x98] sm:$0xf]
        %v231 = vld [vmem:[#allocation5 + $0x9c] sm:$0xf]
        %v232 = vld [vmem:[#allocation5 + $0xa0] sm:$0xf]
        %v233 = vld [vmem:[#allocation5 + $0xa4] sm:$0xf]
        %v234 = vld [vmem:[#allocation5 + $0xa8] sm:$0xf]
        %v235 = vld [vmem:[#allocation5 + $0xac] sm:$0xf]
        %v236 = vld [vmem:[#allocation5 + $0xb0] sm:$0xf]
        %v237 = vld [vmem:[#allocation5 + $0xb4] sm:$0xf]
        %v238 = vld [vmem:[#allocation5 + $0xb8] sm:$0xf]
        %v239 = vld [vmem:[#allocation5 + $0xbc] sm:$0xf]
        %v240 = vld [vmem:[#allocation5 + $0xc0] sm:$0xf]
        %v241 = vld [vmem:[#allocation5 + $0xc4] sm:$0xf]
        %v242 = vld [vmem:[#allocation5 + $0xc8] sm:$0xf]
        %v243 = vld [vmem:[#allocation5 + $0xcc] sm:$0xf]
        %v244 = vld [vmem:[#allocation5 + $0xd0] sm:$0xf]
        %v245 = vld [vmem:[#allocation5 + $0xd4] sm:$0xf]
        %v246 = vld [vmem:[#allocation5 + $0xd8] sm:$0xf]
        %v247 = vld [vmem:[#allocation5 + $0xdc] sm:$0xf]
        %v248 = vld [vmem:[#allocation5 + $0xe0] sm:$0xf]
        %v249 = vld [vmem:[#allocation5 + $0xe4] sm:$0xf]
        %v250 = vld [vmem:[#allocation5 + $0xe8] sm:$0xf]
        %v251 = vld [vmem:[#allocation5 + $0xec] sm:$0xf]
        %v252 = vld [vmem:[#allocation5 + $0xf0] sm:$0xf]
        %v253 = vld [vmem:[#allocation5 + $0xf4] sm:$0xf]
        %v254 = vld [vmem:[#allocation5 + $0xf8] sm:$0xf]
        %v255 = vld [vmem:[#allocation5 + $0xfc] sm:$0xf]
        %v256 = vld [vmem:[#allocation5 + $0x100] sm:$0xf]
        %v257 = vld [vmem:[#allocation5 + $0x104] sm:$0xf]
        %v258 = vld [vmem:[#allocation5 + $0x108] sm:$0xf]
        %v259 = vld [vmem:[#allocation5 + $0x10c] sm:$0xf]
        %v260 = vld [vmem:[#allocation5 + $0x110] sm:$0xf]
        %v261 = vld [vmem:[#allocation5 + $0x114] sm:$0xf]
        %v262 = vld [vmem:[#allocation5 + $0x118] sm:$0xf]
        %v263 = vld [vmem:[#allocation5 + $0x11c] sm:$0xf]
        %v276 = vunpack.c.l.b16 %v180
        %v277 = vunpack.c.h.b16 %v180
        %v278 = vunpack.c.l.b16 %v181
        %v279 = vunpack.c.h.b16 %v181
        %v280 = vunpack.c.l.b16 %v182
        %v281 = vunpack.c.l.b16 %v183
        %v282 = vunpack.c.h.b16 %v183
        %v283 = vunpack.c.l.b16 %v184
        %v284 = vunpack.c.h.b16 %v184
        %v285 = vunpack.c.l.b16 %v185
        %v286 = vunpack.c.l.b16 %v186
        %v287 = vunpack.c.h.b16 %v186
        %v288 = vunpack.c.l.b16 %v187
        %v289 = vunpack.c.h.b16 %v187
        %v290 = vunpack.c.l.b16 %v188
        %v291 = vunpack.c.l.b16 %v189
        %v292 = vunpack.c.h.b16 %v189
        %v293 = vunpack.c.l.b16 %v190
        %v294 = vunpack.c.h.b16 %v190
        %v295 = vunpack.c.l.b16 %v191
        %v296 = vpack.c.b16 %v281, %v276
        %v297 = vpack.c.b16 %v282, %v277
        %v298 = vpack.c.b16 %v283, %v278
        %v299 = vpack.c.b16 %v284, %v279
        %v300 = vpack.c.b16 %v285, %v280
        %v301 = vpack.c.b16 %v291, %v286
        %v302 = vpack.c.b16 %v292, %v287
        %v303 = vpack.c.b16 %v293, %v288
        %v304 = vpack.c.b16 %v294, %v289
        %v305 = vpack.c.b16 %v295, %v290
        %v386 = vunpack.c.l.b16 %v192
        %v387 = vunpack.c.l.b16 %v193
        %v388 = vunpack.c.l.b16 %v194
        %v389 = vunpack.c.l.b16 %v195
        %v390 = vunpack.c.l.b16 %v196
        %v391 = vunpack.c.l.b16 %v197
        %v392 = vunpack.c.l.b16 %v198
        %v393 = vunpack.c.l.b16 %v199
        %v394 = vunpack.c.l.b16 %v200
        %v395 = vunpack.c.l.b16 %v201
        %v396 = vunpack.c.l.b16 %v202
        %v397 = vunpack.c.l.b16 %v203
        %v398 = vunpack.c.l.b16 %v204
        %v399 = vunpack.c.l.b16 %v205
        %v400 = vunpack.c.l.b16 %v206
        %v401 = vunpack.c.l.b16 %v207
        %v402 = vunpack.c.l.b16 %v208
        %v403 = vunpack.c.l.b16 %v209
        %v404 = vunpack.c.l.b16 %v210
        %v405 = vunpack.c.l.b16 %v211
        %v406 = vunpack.c.l.b16 %v212
        %v407 = vunpack.c.l.b16 %v213
        %v408 = vunpack.c.l.b16 %v214
        %v409 = vunpack.c.l.b16 %v215
        %v410 = vunpack.c.l.b16 %v216
        %v411 = vunpack.c.l.b16 %v217
        %v412 = vunpack.c.l.b16 %v218
        %v413 = vunpack.c.l.b16 %v219
        %v414 = vunpack.c.l.b16 %v220
        %v415 = vunpack.c.l.b16 %v221
        %v416 = vunpack.c.l.b16 %v222
        %v417 = vunpack.c.l.b16 %v223
        %v418 = vunpack.c.l.b16 %v224
        %v419 = vunpack.c.l.b16 %v225
        %v420 = vunpack.c.l.b16 %v226
        %v421 = vunpack.c.l.b16 %v227
        %v422 = vunpack.c.l.b16 %v228
        %v423 = vunpack.c.l.b16 %v229
        %v424 = vunpack.c.l.b16 %v230
        %v425 = vunpack.c.l.b16 %v231
        %v426 = vunpack.c.l.b16 %v232
        %v427 = vunpack.c.l.b16 %v233
        %v428 = vunpack.c.l.b16 %v234
        %v429 = vunpack.c.l.b16 %v235
        %v430 = vunpack.c.l.b16 %v236
        %v431 = vunpack.c.l.b16 %v237
        %v432 = vunpack.c.l.b16 %v238
        %v433 = vunpack.c.l.b16 %v239
        %v434 = vunpack.c.l.b16 %v240
        %v435 = vunpack.c.l.b16 %v241
        %v436 = vunpack.c.l.b16 %v242
        %v437 = vunpack.c.l.b16 %v243
        %v438 = vunpack.c.l.b16 %v244
        %v439 = vunpack.c.l.b16 %v245
        %v440 = vunpack.c.l.b16 %v246
        %v441 = vunpack.c.l.b16 %v247
        %v442 = vunpack.c.l.b16 %v248
        %v443 = vunpack.c.l.b16 %v249
        %v444 = vunpack.c.l.b16 %v250
        %v445 = vunpack.c.l.b16 %v251
        %v446 = vunpack.c.l.b16 %v252
        %v447 = vunpack.c.l.b16 %v253
        %v448 = vunpack.c.l.b16 %v254
        %v449 = vunpack.c.l.b16 %v255
        %v450 = vunpack.c.l.b16 %v256
        %v451 = vunpack.c.l.b16 %v257
        %v452 = vunpack.c.l.b16 %v258
        %v453 = vunpack.c.l.b16 %v259
        %v454 = vunpack.c.l.b16 %v260
        %v455 = vunpack.c.l.b16 %v261
        %v456 = vunpack.c.l.b16 %v262
        %v457 = vunpack.c.l.b16 %v263
        %v458 = vpack.c.b16 %v387, %v386
        %v459 = vpack.c.b16 %v389, %v388
        %v460 = vpack.c.b16 %v391, %v390
        %v461 = vpack.c.b16 %v393, %v392
        %v462 = vpack.c.b16 %v395, %v394
        %v463 = vpack.c.b16 %v397, %v396
        %v464 = vpack.c.b16 %v399, %v398
        %v465 = vpack.c.b16 %v401, %v400
        %v466 = vpack.c.b16 %v403, %v402
        %v467 = vpack.c.b16 %v405, %v404
        %v468 = vpack.c.b16 %v407, %v406
        %v469 = vpack.c.b16 %v409, %v408
        %v470 = vpack.c.b16 %v411, %v410
        %v471 = vpack.c.b16 %v413, %v412
        %v472 = vpack.c.b16 %v415, %v414
        %v473 = vpack.c.b16 %v417, %v416
        %v474 = vpack.c.b16 %v419, %v418
        %v475 = vpack.c.b16 %v421, %v420
        %v476 = vpack.c.b16 %v423, %v422
        %v477 = vpack.c.b16 %v425, %v424
        %v478 = vpack.c.b16 %v427, %v426
        %v479 = vpack.c.b16 %v429, %v428
        %v480 = vpack.c.b16 %v431, %v430
        %v481 = vpack.c.b16 %v433, %v432
        %v482 = vpack.c.b16 %v435, %v434
        %v483 = vpack.c.b16 %v437, %v436
        %v484 = vpack.c.b16 %v439, %v438
        %v485 = vpack.c.b16 %v441, %v440
        %v486 = vpack.c.b16 %v443, %v442
        %v487 = vpack.c.b16 %v445, %v444
        %v488 = vpack.c.b16 %v447, %v446
        %v489 = vpack.c.b16 %v449, %v448
        %v490 = vpack.c.b16 %v451, %v450
        %v491 = vpack.c.b16 %v453, %v452
        %v492 = vpack.c.b16 %v455, %v454
        %v493 = vpack.c.b16 %v457, %v456
        %vm530 = vcmask 523264
        %v532 = vsel %vm530, %v300, 0
        %v535 = vsel %vm530, %v305, 0
        %537 = vmatprep.subr.bf16.mxu0 0
        %538 = vmatpush1.bf16.msra.mxu0 %v465
        %539 = vmatprep.subr.bf16.mxu0 0
        %540 = vmatpush1.bf16.msra.mxu0 %v464
        %541 = vmatprep.subr.bf16.mxu0 0
        %542 = vmatpush1.bf16.msra.mxu0 %v463
        %543 = vmatprep.subr.bf16.mxu0 0
        %544 = vmatpush1.bf16.msra.mxu0 %v462
        %545 = vmatprep.subr.bf16.mxu0 0
        %546 = vmatpush1.bf16.msra.mxu0 %v461
        %547 = vmatprep.subr.bf16.mxu0 0
        %548 = vmatpush1.bf16.msra.mxu0 %v460
        %549 = vmatprep.subr.bf16.mxu0 0
        %550 = vmatpush1.bf16.msra.mxu0 %v459
        %551 = vmatprep.subr.bf16.mxu0 0
        %552 = vmatpush1.bf16.msra.mxu0 %v458
        %553 = vmatprep.subr.bf16.mxu0 0
        %554 = vmatpush2.bf16.msra.mxu0 %v473
        %555 = vmatprep.subr.bf16.mxu0 0
        %556 = vmatpush2.bf16.msra.mxu0 %v472
        %557 = vmatprep.subr.bf16.mxu0 0
        %558 = vmatpush2.bf16.msra.mxu0 %v471
        %559 = vmatprep.subr.bf16.mxu0 0
        %560 = vmatpush2.bf16.msra.mxu0 %v470
        %561 = vmatprep.subr.bf16.mxu0 0
        %562 = vmatpush2.bf16.msra.mxu0 %v469
        %563 = vmatprep.subr.bf16.mxu0 0
        %564 = vmatpush2.bf16.msra.mxu0 %v468
        %565 = vmatprep.subr.bf16.mxu0 0
        %566 = vmatpush2.bf16.msra.mxu0 %v467
        %567 = vmatprep.subr.bf16.mxu0 0
        %568 = vmatpush2.bf16.msra.mxu0 %v466
        %569 = vmatprep.mubr.bf16.mxu0 %v297
        %570 = vmatmul.mubr.bf16.gmra.mxu0 %v296
        %v571 = vpop.f32.mrf.mxu0
        %v572 = vadd.f32 0.0, %v571
        %v573 = vpop.f32.mrf.mxu0
        %v574 = vpop.f32.mrf.mxu0
        %v575 = vadd.f32 0.0, %v574
        %v576 = vpop.f32.mrf.mxu0
        %577 = vmatprep.mubr.bf16.mxu0 %v302
        %578 = vmatmul.mubr.bf16.gmra.mxu0 %v301
        %v579 = vpop.f32.mrf.mxu0
        %v580 = vadd.f32 0.0, %v579
        %v581 = vpop.f32.mrf.mxu0
        %v582 = vpop.f32.mrf.mxu0
        %v583 = vadd.f32 0.0, %v582
        %v584 = vpop.f32.mrf.mxu0
        %585 = vdwg.mxu0
        %586 = vmatprep.subr.bf16.mxu0 0
        %587 = vmatpush1.bf16.msra.mxu0 %v481
        %588 = vmatprep.subr.bf16.mxu0 0
        %589 = vmatpush1.bf16.msra.mxu0 %v480
        %590 = vmatprep.subr.bf16.mxu0 0
        %591 = vmatpush1.bf16.msra.mxu0 %v479
        %592 = vmatprep.subr.bf16.mxu0 0
        %593 = vmatpush1.bf16.msra.mxu0 %v478
        %594 = vmatprep.subr.bf16.mxu0 0
        %595 = vmatpush1.bf16.msra.mxu0 %v477
        %596 = vmatprep.subr.bf16.mxu0 0
        %597 = vmatpush1.bf16.msra.mxu0 %v476
        %598 = vmatprep.subr.bf16.mxu0 0
        %599 = vmatpush1.bf16.msra.mxu0 %v475
        %600 = vmatprep.subr.bf16.mxu0 0
        %601 = vmatpush1.bf16.msra.mxu0 %v474
        %602 = vmatprep.subr.bf16.mxu0 0
        %603 = vmatpush2.bf16.msra.mxu0 %v489
        %604 = vmatprep.subr.bf16.mxu0 0
        %605 = vmatpush2.bf16.msra.mxu0 %v488
        %606 = vmatprep.subr.bf16.mxu0 0
        %607 = vmatpush2.bf16.msra.mxu0 %v487
        %608 = vmatprep.subr.bf16.mxu0 0
        %609 = vmatpush2.bf16.msra.mxu0 %v486
        %610 = vmatprep.subr.bf16.mxu0 0
        %611 = vmatpush2.bf16.msra.mxu0 %v485
        %612 = vmatprep.subr.bf16.mxu0 0
        %613 = vmatpush2.bf16.msra.mxu0 %v484
        %614 = vmatprep.subr.bf16.mxu0 0
        %615 = vmatpush2.bf16.msra.mxu0 %v483
        %616 = vmatprep.subr.bf16.mxu0 0
        %617 = vmatpush2.bf16.msra.mxu0 %v482
        %618 = vmatprep.mubr.bf16.mxu0 %v299
        %619 = vmatmul.mubr.bf16.gmra.mxu0 %v298
        %v620 = vpop.f32.mrf.mxu0
        %v621 = vadd.f32 %v572, %v620
        %v622 = vpop.f32.mrf.mxu0
        %v623 = vpop.f32.mrf.mxu0
        %v624 = vadd.f32 %v575, %v623
        %v625 = vpop.f32.mrf.mxu0
        %626 = vmatprep.mubr.bf16.mxu0 %v304
        %627 = vmatmul.mubr.bf16.gmra.mxu0 %v303
        %v628 = vpop.f32.mrf.mxu0
        %v629 = vadd.f32 %v580, %v628
        %v630 = vpop.f32.mrf.mxu0
        %v631 = vpop.f32.mrf.mxu0
        %v632 = vadd.f32 %v583, %v631
        %v633 = vpop.f32.mrf.mxu0
        %634 = vdwg.mxu0
        %635 = vmatprep.subr.bf16.mxu0 0
        %636 = vmatpush1.bf16.msra.mxu0 0
        %637 = vmatprep.subr.bf16.mxu0 0
        %638 = vmatpush1.bf16.msra.mxu0 0
        %639 = vmatprep.subr.bf16.mxu0 0
        %640 = vmatpush1.bf16.msra.mxu0 0
        %641 = vmatprep.subr.bf16.mxu0 0
        %642 = vmatpush1.bf16.msra.mxu0 0
        %643 = vmatprep.subr.bf16.mxu0 0
        %644 = vmatpush1.bf16.msra.mxu0 %v493
        %645 = vmatprep.subr.bf16.mxu0 0
        %646 = vmatpush1.bf16.msra.mxu0 %v492
        %647 = vmatprep.subr.bf16.mxu0 0
        %648 = vmatpush1.bf16.msra.mxu0 %v491
        %649 = vmatprep.subr.bf16.mxu0 0
        %650 = vmatpush1.bf16.msra.mxu0 %v490
        %651 = vmatprep.subr.bf16.mxu0 0
        %652 = vmatpush2.bf16.msra.mxu0 0
        %653 = vmatprep.subr.bf16.mxu0 0
        %654 = vmatpush2.bf16.msra.mxu0 0
        %655 = vmatprep.subr.bf16.mxu0 0
        %656 = vmatpush2.bf16.msra.mxu0 0
        %657 = vmatprep.subr.bf16.mxu0 0
        %658 = vmatpush2.bf16.msra.mxu0 0
        %659 = vmatprep.subr.bf16.mxu0 0
        %660 = vmatpush2.bf16.msra.mxu0 0
        %661 = vmatprep.subr.bf16.mxu0 0
        %662 = vmatpush2.bf16.msra.mxu0 0
        %663 = vmatprep.subr.bf16.mxu0 0
        %664 = vmatpush2.bf16.msra.mxu0 0
        %665 = vmatprep.subr.bf16.mxu0 0
        %666 = vmatpush2.bf16.msra.mxu0 0
        %667 = vmatprep.mubr.bf16.mxu0 0
        %668 = vmatmul.mubr.bf16.gmra.mxu0 %v532
        %v669 = vpop.f32.mrf.mxu0
        %v670 = vadd.f32 %v621, %v669
        %v671 = vpop.f32.mrf.mxu0
        %v672 = vpop.f32.mrf.mxu0
        %v673 = vadd.f32 %v624, %v672
        %v674 = vpop.f32.mrf.mxu0
        %675 = vmatprep.mubr.bf16.mxu0 0
        %676 = vmatmul.mubr.bf16.gmra.mxu0 %v535
        %v677 = vpop.f32.mrf.mxu0
        %v678 = vadd.f32 %v629, %v677
        %v679 = vpop.f32.mrf.mxu0
        %v680 = vpop.f32.mrf.mxu0
        %v681 = vadd.f32 %v632, %v680
        %v682 = vpop.f32.mrf.mxu0
        %683 = vdwg.mxu0
        %v684 = vadd.f32 %v670, %v673
        %v685 = vadd.f32 %v684, %v678
        %v686 = vadd.f32 %v685, %v681
        %v687 = vrot.slane %v686, 4
        %v688 = vadd.f32 %v686, %v687
        %v689 = vrot.slane %v688, 2
        %v690 = vadd.f32 %v688, %v689
        %v691 = vrot.slane %v690, 1
        %v692 = vadd.f32 %v690, %v691
        %693 = vst [vmem:[%s177] sm:$0x1] %v692
        %v694 = vmul.f32 %v670, %v670
        %v695 = vmul.f32 %v673, %v673
        %v696 = vmul.f32 %v678, %v678
        %v697 = vmul.f32 %v681, %v681
        %v698 = vadd.f32 %v694, %v695
        %v699 = vadd.f32 %v698, %v696
        %v700 = vadd.f32 %v699, %v697
        %v701 = vrot.slane %v700, 4
        %v702 = vadd.f32 %v700, %v701
        %v703 = vrot.slane %v702, 2
        %v704 = vadd.f32 %v702, %v703
        %v705 = vrot.slane %v704, 1
        %v706 = vadd.f32 %v704, %v705
        %707 = vst [vmem:[%s177 + $0x1] sm:$0x1] %v706
        %s708 = sand.u32 %s75, 1
        %s709 = scalar_lea.sflag [#allocation4], %s708
        %s710 = sand.u32 %s75, 1
        %s711 = smul.addr %s710, 8
        %s712 = scalar_lea.vmem [#allocation7], %s711
        // Predicated region
        $region37: #{tpu_custom_call.1} parent=27 // pred_check
          %p713 = pneg %p85
        $region38: #{tpu_custom_call.1} parent=27 // pred_check_branch
          %715 = sbr.rel (%p713) target = $region40
        $region39: #{tpu_custom_call.1} parent=27 // pred_region
          %s717 = ssub.s32 128, 128
          %718 = vsyncadd %s709, %s717
          %s719 = smul.addr %s20, 128
          %s720 = scalar_lea.hbm %s2, %s719
          %s722 = sshll.u32 %s712, 4
          %s723 = int_to_ptr.vmem [resolvable:$true] %s722
          %725 = dma.vmem_to_hbm [thread:$0]  %s723, 128, %s720, %s709
        $region40: #{tpu_custom_call.1} parent=27 // pred_fallthru
          _
      $region28: #{tpu_custom_call.1} parent=5 // pred_fallthru
        _
      %p726 = scmp.le.s32.totalorder 2, %s15
      // Predicated region
      $region41: #{tpu_custom_call.1} parent=5 // pred_check
        %p727 = pneg %p726
      $region42: #{tpu_custom_call.1} parent=5 // pred_check_branch
        %729 = sbr.rel (%p727) target = $region44
      $region43: #{tpu_custom_call.1} parent=5 // pred_region
        %s730 = ssub.s32 %s15, 2
        // Predicated region
        $region45: #{tpu_custom_call.1} parent=43 // pred_check
          %p731 = pneg %p91
        $region46: #{tpu_custom_call.1} parent=43 // pred_check_branch
          %733 = sbr.rel (%p731) target = $region48
        $region47: #{tpu_custom_call.1} parent=43 // pred_region
          %s734 = sand.u32 %s76, 1
          %s735 = scalar_lea.sflag [#allocation4], %s734
          %s736 = sand.u32 %s76, 1
          %s737 = smul.addr %s736, 8
          %s738 = scalar_lea.vmem [#allocation7], %s737
          %739 = dma.done %s735, 128
        $region48: #{tpu_custom_call.1} parent=43 // pred_fallthru
          _
      $region44: #{tpu_custom_call.1} parent=5 // pred_fallthru
        _
    $region6: #{tpu_custom_call.1} parent=1 // loop_footer
      %s19 = sadd.s32 1, %s15
    $region7: #{tpu_custom_call.1} parent=1 // loop_footer_branch
      %14 = sbr.rel target = $region3
    $region8: #{tpu_custom_call.1} parent=1 // loop_exit
      _
    %740 = vsyncpa [#allocation3], 1
    %s741 = scalar_lea.sflag [#allocation3], 1
    %742 = vsyncpa %s741, 1
    %743 = vsyncpa [#allocation6], 1
    %744 = vsyncpa [#allocation4], 1
    %s745 = scalar_lea.sflag [#allocation4], 1
    %746 = vsyncpa %s745, 1

</llo_original>
